<compile_context>
chip_gen: v6e
topology: v6e:2x2x1
jax: 0.10.0
libtpu: 0.0.40
codegen_flags: <defaults>
</compile_context>

<pallas_src>
import jax
import jax.numpy as jnp
from jax.experimental import pallas as pl
from jax.experimental.pallas import tpu as pltpu


# ---------------------------------------------------------------------------
# Primary path: torch.nn.Identity is a pure no-op.  Returning x costs nothing
# (no kernel launch, zero HBM traffic) and is always correct.
# ---------------------------------------------------------------------------
def identity(x: jax.Array) -> jax.Array:
    """torch.nn.Identity forward: returns x unchanged."""
    return x


# ---------------------------------------------------------------------------
# Aliased no-op Pallas kernel: zero HBM traffic *only* when the caller
# guarantees the input buffer is donated/aliasable at the jit boundary;
# otherwise XLA inserts a defensive copy in front of the aliased custom call.
# ---------------------------------------------------------------------------
def _identity_alias_kernel(x_hbm_ref, o_hbm_ref):
    # Output aliases the input HBM buffer: nothing to move.
    pass


def identity_aliased(x: jax.Array) -> jax.Array:
    if x.size == 0:
        return x
    return pl.pallas_call(
        _identity_alias_kernel,
        out_shape=jax.ShapeDtypeStruct(x.shape, x.dtype),
        in_specs=[pl.BlockSpec(memory_space=pl.ANY)],
        out_specs=pl.BlockSpec(memory_space=pl.ANY),
        input_output_aliases={0: 0},
        cost_estimate=pl.CostEstimate(flops=0, transcendentals=0,
                                      bytes_accessed=0),
    )(x)


# ---------------------------------------------------------------------------
# Copy path (distinct output buffer): one raw HBM->HBM DMA over the flat
# buffer.  The DMA engines stream at full HBM bandwidth; the TensorCore only
# issues the descriptor and waits on the completion semaphore.
# ---------------------------------------------------------------------------
def _identity_dma_kernel(x_hbm_ref, o_hbm_ref, sem):
    cp = pltpu.make_async_copy(x_hbm_ref, o_hbm_ref, sem)
    cp.start()
    cp.wait()


def identity_copy(x: jax.Array) -> jax.Array:
    """Identity that materializes a fresh output buffer (single HBM->HBM DMA)."""
    if x.size == 0:
        return x

    orig_shape = x.shape
    n = x.size
    flat = x.reshape(-1)  # contiguous flatten: metadata-only, no HBM pass

    out_flat = pl.pallas_call(
        _identity_dma_kernel,
        out_shape=jax.ShapeDtypeStruct((n,), x.dtype),
        in_specs=[pl.BlockSpec(memory_space=pl.ANY)],
        out_specs=pl.BlockSpec(memory_space=pl.ANY),
        scratch_shapes=[pltpu.SemaphoreType.DMA(())],
        cost_estimate=pl.CostEstimate(
            flops=0, transcendentals=0,
            bytes_accessed=2 * n * x.dtype.itemsize),
    )(flat)

    return out_flat.reshape(orig_shape)


if __name__ == "__main__":
    key = jax.random.PRNGKey(0)
    # Small NCHW input consistent with a ResNet-style module.
    x = jax.random.normal(key, (2, 4, 16, 16), dtype=jnp.float32)

    # Primary path: pure Python no-op.
    y = identity(x)
    jax.block_until_ready(y)
    assert y.shape == x.shape and y.dtype == x.dtype
    assert bool(jnp.array_equal(y, x))

    # Aliased no-op Pallas kernel (zero-copy when the input is donated).
    ya = identity_aliased(x)
    jax.block_until_ready(ya)
    assert ya.shape == x.shape and ya.dtype == x.dtype
    assert bool(jnp.array_equal(ya, x))

    # Copy path: single HBM->HBM DMA into a distinct output buffer.
    z = identity_copy(x)
    jax.block_until_ready(z)
    assert z.shape == x.shape and z.dtype == x.dtype
    assert bool(jnp.array_equal(z, x))

    print("KERNEL_OK")
</pallas_src>

<mosaic_0001>
module attributes {stable_mosaic.version = 11 : i64} {
  func.func @_identity_alias_kernel(%arg0: memref<2x4x16x16xf32, #tpu.memory_space<any>>, %arg1: memref<2x4x16x16xf32, #tpu.memory_space<any>>) attributes {dimension_semantics = [], scalar_prefetch = 0 : i64, scratch_operands = 0 : i64, tpu.core_type = #tpu.core_type<tc>} {
    return
  }
}

</mosaic_0001>

<llo_original>
// kernel: tpu_custom_call.1
$region0: #{tpu_custom_call.1}
  #allocation0 [shape = 'u32[]', space=smem, size = 0x4, offset = 0x4, fixed_abs, tag = 'smem constant byte address 0x4 - core index']
  #allocation1 [shape = 'u32[144,128]{1,0:T(1,128)}', space=vmem, size = 0x12000, scoped, tag = 'internal scratch']
  %s0 = inlined_call_operand.hbm [shape: f32[2,4,16,16], index: 0, kind: input, shape index: {}, may-alias: {0,1}]
  %s1 = inlined_call_operand.hbm [shape: f32[2,4,16,16], index: 1, kind: output, shape index: {}, may-alias: {0,1}]
  %s2 = sld [smem:[#allocation0]]
  $region2: #{tpu_custom_call.1} parent=0
    _
  %s4 = ssub.s32 1, %s2
  %s5 = scalar_select 0, %s4, %s2

</llo_original>
